<compile_context>
chip_gen: v7x
topology: tpu7x:2x2x1
jax: 0.10.0
libtpu: 0.0.40
codegen_flags: <defaults>
</compile_context>

<pallas_src>
import functools

import jax
import jax.numpy as jnp
from jax.experimental import pallas as pl
from jax.experimental.pallas import tpu as pltpu


def _gnn_relu_kernel(*refs, step, use_mxu_agg, mxu_dtype):
    """refs = (inv_ref, a_ref, x_ref, W_0..W_{step-1}, b_0..b_{step-1}, out_ref)."""
    inv_ref, a_ref, x_ref = refs[0], refs[1], refs[2]
    w_refs = refs[3:3 + step]
    b_refs = refs[3 + step:3 + 2 * step]
    out_ref = refs[3 + 2 * step]

    inv_rows = inv_ref[...]                     # (L, 1) f32: 1 / sum_i A[0, i, :]
    tb = x_ref.shape[0]
    l = x_ref.shape[1]

    # Weights/biases are shared by every batch element in the block: load once.
    ws = [r[...] for r in w_refs]               # mxu dtype, lane-padded to 128
    bias = [r[...] for r in b_refs]             # f32, (1, H_pad)

    for b2 in range(tb):                        # static unroll over the batch tile
        if use_mxu_agg:
            a = a_ref[b2]                       # (L, L), stays in MXU dtype
        else:
            a = a_ref[b2].astype(jnp.float32)   # tiny L -> VPU aggregation in f32
        h = x_ref[b2]                           # (L, H_in)

        for s in range(step):
            # Feature transform on the MXU, f32 accumulation.
            h = jnp.dot(h.astype(mxu_dtype), ws[s],
                        preferred_element_type=jnp.float32)
            # Fold the column-sum normalizer into the activations (scale-h path):
            #   (A / colsum) @ h == A @ (inv_rows * h)  -- never materializes a
            # scaled copy of A (keeps the largest VMEM consumer single-buffered).
            h = h * inv_rows
            if use_mxu_agg:
                # Neighborhood aggregation: (L, L) @ (L, H_pad) on the MXU.
                h = jnp.dot(a, h.astype(mxu_dtype),
                            preferred_element_type=jnp.float32)
            else:
                # L <= 32: an (L,L)@(L,H) MXU pass is mostly idle; accumulate
                # rank-1 updates on the VPU instead (unrolled, static L).
                acc = a[:, 0:1] * h[0:1, :]
                for j in range(1, l):
                    acc = acc + a[:, j:j + 1] * h[j:j + 1, :]
                h = acc
            h = jnp.maximum(h + bias[s], 0.0)   # bias + ReLU
            # TODO(synk): dropout (drop > 0) not implemented; module default drop=0.0.

        out_ref[b2] = h.astype(out_ref.dtype)


def _vmem_budget_bytes():
    """Generation-aware VMEM budget: ~3/4 of physical, leaving compiler headroom
    (v5e/v6e: ~96 MiB of 128 MiB; v7x: ~48 MiB of 64 MiB)."""
    try:
        cap = int(pltpu.get_tpu_info().vmem_capacity_bytes)
    except Exception:  # pragma: no cover - conservative fallback (v7x-sized)
        cap = 64 * 1024 * 1024
    return (cap * 3) // 4


def _pick_batch_tile(B, per_batch_bytes, fixed_bytes, vmem_budget, max_tb=8):
    """Largest divisor of B that (a) fits the VMEM budget, (b) keeps >= ~4 grid
    steps for DMA/compute overlap and the v7x dual-TensorCore batch split, and
    (c) bounds the in-kernel batch unroll."""
    cap = (vmem_budget - fixed_bytes) // max(per_batch_bytes, 1)
    cap = max(1, min(int(cap), max_tb, max(1, pl.cdiv(B, 4))))
    tb = min(B, cap)
    while B % tb:
        tb -= 1
    return int(tb)


def gnn_relu(X, A, Ws, bs, *, mxu_dtype=jnp.bfloat16):
    """X: (B, L, H_in), A: (B, L, L), Ws/bs: per-step params -> (B, L, hidden) f32.

    Precondition (same as the PyTorch module): no column sum of A[0] is zero,
    otherwise the normalizer is inf/NaN.
    """
    X = jnp.asarray(X, jnp.float32)
    A = jnp.asarray(A, jnp.float32)
    B, L, H_in = X.shape
    step = len(Ws)
    H = Ws[-1].shape[1]
    H_pad = int(pl.cdiv(H, 128) * 128)          # lane-dense hidden width
    ae = jnp.dtype(mxu_dtype).itemsize

    # --- parameters: zero-pad EVERY step's hidden width to a multiple of 128
    # (padded lanes stay exactly 0 through bias+ReLU) and cast weights to the
    # MXU dtype once on the host side.
    Ws_p, bs_p = [], []
    for s in range(step):
        d_in = H_in if s == 0 else H
        d_in_pad = H_in if s == 0 else H_pad
        w = jnp.asarray(Ws[s], jnp.float32)
        b = jnp.asarray(bs[s], jnp.float32).reshape(1, -1)
        w = jnp.pad(w, ((0, d_in_pad - d_in), (0, H_pad - H)))
        b = jnp.pad(b, ((0, 0), (0, H_pad - H)))
        Ws_p.append(w.astype(mxu_dtype))
        bs_p.append(b)                          # bias stays f32 (tiny)

    # 1 / column-sums of A[0]  (matches A.sum(1, keepdim=True)[0] in the module),
    # computed in f32 from the unquantized adjacency, shaped (L, 1) so the kernel
    # can row-scale activations without any in-kernel relayout.
    inv_denom = (1.0 / jnp.sum(A[0], axis=0)).reshape(L, 1).astype(jnp.float32)

    # DMA the big operands (A dominates HBM traffic) in the MXU dtype.
    A_in = A.astype(mxu_dtype)
    X_in = X.astype(mxu_dtype)

    use_mxu_agg = L > 32

    # --- VMEM accounting (double buffering + live temps) -> batch tile TB.
    act_f32 = L * H_pad * 4
    per_b = 2 * (L * L * ae)                    # A block, double-buffered
    per_b += 2 * (L * H_in * ae)                # X block, double-buffered
    per_b += 2 * act_f32                        # out block (f32), double-buffered
    per_b += 3 * act_f32 + 2 * L * H_pad * ae   # live f32 temps + MXU-input casts
    if not use_mxu_agg:
        per_b += L * L * 4                      # f32 copy of A for the VPU path
    fixed = 2 * sum(int(w.size) * ae for w in Ws_p)   # weights: constant index map,
    fixed += 2 * sum(int(b.size) * 4 for b in bs_p)   #  but still 2 VMEM buffers each
    fixed += 2 * L * 4 + (1 << 20)              # inv + compiler scratch slack

    budget = _vmem_budget_bytes()
    TB = _pick_batch_tile(B, per_b, fixed, budget)
    grid = (B // TB,)

    in_specs = [
        pl.BlockSpec((L, 1), lambda g: (0, 0)),            # inv_denom
        pl.BlockSpec((TB, L, L), lambda g: (g, 0, 0)),      # A block
        pl.BlockSpec((TB, L, H_in), lambda g: (g, 0, 0)),   # X block
    ]
    in_specs += [pl.BlockSpec(w.shape, lambda g: (0, 0)) for w in Ws_p]
    in_specs += [pl.BlockSpec(b.shape, lambda g: (0, 0)) for b in bs_p]
    out_spec = pl.BlockSpec((TB, L, H_pad), lambda g: (g, 0, 0))

    flops = 0
    for s in range(step):
        d_in = H_in if s == 0 else H_pad
        flops += 2 * B * L * d_in * H_pad       # X @ W_s
        flops += 2 * B * L * L * H_pad          # normed_A @ h
    bytes_accessed = (ae * (int(A_in.size) + int(X_in.size))
                      + 4 * B * L * H_pad
                      + ae * sum(int(w.size) for w in Ws_p)
                      + 4 * sum(int(b.size) for b in bs_p)
                      + 4 * L)

    kernel = functools.partial(_gnn_relu_kernel, step=step,
                               use_mxu_agg=use_mxu_agg, mxu_dtype=mxu_dtype)

    out = pl.pallas_call(
        kernel,
        out_shape=jax.ShapeDtypeStruct((B, L, H_pad), jnp.float32),
        grid=grid,
        in_specs=in_specs,
        out_specs=out_spec,
        compiler_params=pltpu.CompilerParams(
            dimension_semantics=("parallel",),
            vmem_limit_bytes=int(budget)),
        cost_estimate=pl.CostEstimate(
            flops=int(flops), transcendentals=0,
            bytes_accessed=int(bytes_accessed)),
    )(inv_denom, A_in, X_in, *Ws_p, *bs_p)

    return out[..., :H] if H_pad != H else out


def gnn_relu_ref(X, A, Ws, bs):
    """Plain-JAX (f32) reference matching the PyTorch forward."""
    normed_A = A / jnp.sum(A, axis=1, keepdims=True)[0]   # (B,L,L) / (1,L)
    h = X
    for W, b in zip(Ws, bs):
        h = jnp.matmul(h, W)
        h = jnp.matmul(normed_A, h)
        h = jax.nn.relu(h + b)
    return h


if __name__ == "__main__":
    def _make_case(key, B, L, input_dim, hidden_dim, step):
        ks = jax.random.split(key, 2 + 2 * step)
        X = jax.random.normal(ks[0], (B, L, input_dim), dtype=jnp.float32)
        # Positive adjacency so the column-sum normalizer is well conditioned.
        A = jax.random.uniform(ks[1], (B, L, L), dtype=jnp.float32,
                               minval=0.1, maxval=1.0)
        Ws, bs = [], []
        d_in = input_dim
        for s in range(step):
            Ws.append(jax.random.normal(ks[2 + 2 * s], (d_in, hidden_dim),
                                        jnp.float32) * 0.1)
            bs.append(jax.random.normal(ks[3 + 2 * s], (hidden_dim,),
                                        jnp.float32) * 0.1)
            d_in = hidden_dim
        return X, A, Ws, bs

    key = jax.random.PRNGKey(0)
    k1, k2 = jax.random.split(key)

    # Case 1: module-default toy shapes -> VPU aggregation path (L <= 32).
    X, A, Ws, bs = _make_case(k1, B=2, L=8, input_dim=16, hidden_dim=32, step=2)
    out = jax.block_until_ready(gnn_relu(X, A, Ws, bs))
    ref = gnn_relu_ref(X, A, Ws, bs)
    assert out.shape == ref.shape == (2, 8, 32)
    assert out.dtype == jnp.float32
    assert jnp.allclose(out, ref, atol=3e-2, rtol=3e-2), (
        "mismatch vs reference (max abs err %.3e)"
        % float(jnp.max(jnp.abs(out - ref))))

    # Case 2: larger seq -> MXU aggregation path, multi-step batch grid.
    X2, A2, Ws2, bs2 = _make_case(k2, B=4, L=64, input_dim=16, hidden_dim=64, step=2)
    out2 = jax.block_until_ready(gnn_relu(X2, A2, Ws2, bs2))
    ref2 = gnn_relu_ref(X2, A2, Ws2, bs2)
    assert out2.shape == ref2.shape == (4, 64, 64)
    assert jnp.allclose(out2, ref2, atol=3e-2, rtol=3e-2), (
        "mismatch vs reference (max abs err %.3e)"
        % float(jnp.max(jnp.abs(out2 - ref2))))

    print("KERNEL_OK")
</pallas_src>

<mosaic_0001>
module attributes {stable_mosaic.version = 11 : i64} {
  func.func @_gnn_relu_kernel(%arg0: i32, %arg1: memref<8x1xf32, #tpu.memory_space<vmem>>, %arg2: memref<1x8x8xbf16, #tpu.memory_space<vmem>>, %arg3: memref<1x8x16xbf16, #tpu.memory_space<vmem>>, %arg4: memref<16x128xbf16, #tpu.memory_space<vmem>>, %arg5: memref<128x128xbf16, #tpu.memory_space<vmem>>, %arg6: memref<1x128xf32, #tpu.memory_space<vmem>>, %arg7: memref<1x128xf32, #tpu.memory_space<vmem>>, %arg8: memref<1x8x128xf32, #tpu.memory_space<vmem>>) attributes {dimension_semantics = [#tpu.dimension_semantics<parallel>], iteration_bounds = array<i64: 2>, scalar_prefetch = 0 : i64, scratch_operands = 0 : i64, tpu.core_type = #tpu.core_type<tc>, window_params = [{pipeline_mode = #tpu.pipeline_mode<synchronous>, transform_indices = @transform_0, window_bounds = array<i64: 8, 1>}, {transform_indices = @transform_1, window_bounds = array<i64: 1, 8, 8>}, {transform_indices = @transform_2, window_bounds = array<i64: 1, 8, 16>}, {pipeline_mode = #tpu.pipeline_mode<synchronous>, transform_indices = @transform_3, window_bounds = array<i64: 16, 128>}, {pipeline_mode = #tpu.pipeline_mode<synchronous>, transform_indices = @transform_4, window_bounds = array<i64: 128, 128>}, {pipeline_mode = #tpu.pipeline_mode<synchronous>, transform_indices = @transform_5, window_bounds = array<i64: 1, 128>}, {pipeline_mode = #tpu.pipeline_mode<synchronous>, transform_indices = @transform_6, window_bounds = array<i64: 1, 128>}, {transform_indices = @transform_7, window_bounds = array<i64: 1, 8, 128>}]} {
    %c0 = arith.constant 0 : index
    %c0_0 = arith.constant 0 : index
    %0 = vector.load %arg1[%c0, %c0_0] : memref<8x1xf32, #tpu.memory_space<vmem>>, vector<8x1xf32>
    %c0_1 = arith.constant 0 : index
    %c0_2 = arith.constant 0 : index
    %1 = vector.load %arg4[%c0_1, %c0_2] : memref<16x128xbf16, #tpu.memory_space<vmem>>, vector<16x128xbf16>
    %c0_3 = arith.constant 0 : index
    %c0_4 = arith.constant 0 : index
    %2 = vector.load %arg5[%c0_3, %c0_4] : memref<128x128xbf16, #tpu.memory_space<vmem>>, vector<128x128xbf16>
    %c0_5 = arith.constant 0 : index
    %c0_6 = arith.constant 0 : index
    %3 = vector.load %arg6[%c0_5, %c0_6] : memref<1x128xf32, #tpu.memory_space<vmem>>, vector<1x128xf32>
    %c0_7 = arith.constant 0 : index
    %c0_8 = arith.constant 0 : index
    %4 = vector.load %arg7[%c0_7, %c0_8] : memref<1x128xf32, #tpu.memory_space<vmem>>, vector<1x128xf32>
    %c0_9 = arith.constant 0 : index
    %c0_10 = arith.constant 0 : index
    %c0_11 = arith.constant 0 : index
    %5 = vector.load %arg2[%c0_9, %c0_10, %c0_11] : memref<1x8x8xbf16, #tpu.memory_space<vmem>>, vector<1x8x8xbf16>
    %6 = vector.shape_cast %5 : vector<1x8x8xbf16> to vector<8x8xbf16>
    %7 = arith.extf %6 : vector<8x8xbf16> to vector<8x8xf32>
    %c0_12 = arith.constant 0 : index
    %c0_13 = arith.constant 0 : index
    %c0_14 = arith.constant 0 : index
    %8 = vector.load %arg3[%c0_12, %c0_13, %c0_14] : memref<1x8x16xbf16, #tpu.memory_space<vmem>>, vector<1x8x16xbf16>
    %9 = vector.shape_cast %8 : vector<1x8x16xbf16> to vector<8x16xbf16>
    %cst = arith.constant dense<0.000000e+00> : vector<8x128xf32>
    %10 = tpu.matmul %9, %1, %cst {dimension_numbers = #tpu.dot_dimension_numbers<[1], [0], [0], [1], [0, 0, 1, 1], [], []>} : vector<8x16xbf16>, vector<16x128xbf16>, vector<8x128xf32> -> vector<8x128xf32>
    %11 = vector.broadcast %0 : vector<8x1xf32> to vector<8x128xf32>
    %12 = arith.mulf %10, %11 : vector<8x128xf32>
    %13 = vector.extract_strided_slice %7 {offsets = [0, 0], sizes = [8, 1], strides = [1, 1]} : vector<8x8xf32> to vector<8x1xf32>
    %14 = vector.extract_strided_slice %12 {offsets = [0, 0], sizes = [1, 128], strides = [1, 1]} : vector<8x128xf32> to vector<1x128xf32>
    %15 = vector.broadcast %13 : vector<8x1xf32> to vector<8x128xf32>
    %16 = vector.broadcast %14 : vector<1x128xf32> to vector<8x128xf32>
    %17 = arith.mulf %15, %16 : vector<8x128xf32>
    %18 = vector.extract_strided_slice %7 {offsets = [0, 1], sizes = [8, 1], strides = [1, 1]} : vector<8x8xf32> to vector<8x1xf32>
    %19 = vector.extract_strided_slice %12 {offsets = [1, 0], sizes = [1, 128], strides = [1, 1]} : vector<8x128xf32> to vector<1x128xf32>
    %20 = vector.broadcast %18 : vector<8x1xf32> to vector<8x128xf32>
    %21 = vector.broadcast %19 : vector<1x128xf32> to vector<8x128xf32>
    %22 = arith.mulf %20, %21 : vector<8x128xf32>
    %23 = arith.addf %17, %22 : vector<8x128xf32>
    %24 = vector.extract_strided_slice %7 {offsets = [0, 2], sizes = [8, 1], strides = [1, 1]} : vector<8x8xf32> to vector<8x1xf32>
    %25 = vector.extract_strided_slice %12 {offsets = [2, 0], sizes = [1, 128], strides = [1, 1]} : vector<8x128xf32> to vector<1x128xf32>
    %26 = vector.broadcast %24 : vector<8x1xf32> to vector<8x128xf32>
    %27 = vector.broadcast %25 : vector<1x128xf32> to vector<8x128xf32>
    %28 = arith.mulf %26, %27 : vector<8x128xf32>
    %29 = arith.addf %23, %28 : vector<8x128xf32>
    %30 = vector.extract_strided_slice %7 {offsets = [0, 3], sizes = [8, 1], strides = [1, 1]} : vector<8x8xf32> to vector<8x1xf32>
    %31 = vector.extract_strided_slice %12 {offsets = [3, 0], sizes = [1, 128], strides = [1, 1]} : vector<8x128xf32> to vector<1x128xf32>
    %32 = vector.broadcast %30 : vector<8x1xf32> to vector<8x128xf32>
    %33 = vector.broadcast %31 : vector<1x128xf32> to vector<8x128xf32>
    %34 = arith.mulf %32, %33 : vector<8x128xf32>
    %35 = arith.addf %29, %34 : vector<8x128xf32>
    %36 = vector.extract_strided_slice %7 {offsets = [0, 4], sizes = [8, 1], strides = [1, 1]} : vector<8x8xf32> to vector<8x1xf32>
    %37 = vector.extract_strided_slice %12 {offsets = [4, 0], sizes = [1, 128], strides = [1, 1]} : vector<8x128xf32> to vector<1x128xf32>
    %38 = vector.broadcast %36 : vector<8x1xf32> to vector<8x128xf32>
    %39 = vector.broadcast %37 : vector<1x128xf32> to vector<8x128xf32>
    %40 = arith.mulf %38, %39 : vector<8x128xf32>
    %41 = arith.addf %35, %40 : vector<8x128xf32>
    %42 = vector.extract_strided_slice %7 {offsets = [0, 5], sizes = [8, 1], strides = [1, 1]} : vector<8x8xf32> to vector<8x1xf32>
    %43 = vector.extract_strided_slice %12 {offsets = [5, 0], sizes = [1, 128], strides = [1, 1]} : vector<8x128xf32> to vector<1x128xf32>
    %44 = vector.broadcast %42 : vector<8x1xf32> to vector<8x128xf32>
    %45 = vector.broadcast %43 : vector<1x128xf32> to vector<8x128xf32>
    %46 = arith.mulf %44, %45 : vector<8x128xf32>
    %47 = arith.addf %41, %46 : vector<8x128xf32>
    %48 = vector.extract_strided_slice %7 {offsets = [0, 6], sizes = [8, 1], strides = [1, 1]} : vector<8x8xf32> to vector<8x1xf32>
    %49 = vector.extract_strided_slice %12 {offsets = [6, 0], sizes = [1, 128], strides = [1, 1]} : vector<8x128xf32> to vector<1x128xf32>
    %50 = vector.broadcast %48 : vector<8x1xf32> to vector<8x128xf32>
    %51 = vector.broadcast %49 : vector<1x128xf32> to vector<8x128xf32>
    %52 = arith.mulf %50, %51 : vector<8x128xf32>
    %53 = arith.addf %47, %52 : vector<8x128xf32>
    %54 = vector.extract_strided_slice %7 {offsets = [0, 7], sizes = [8, 1], strides = [1, 1]} : vector<8x8xf32> to vector<8x1xf32>
    %55 = vector.extract_strided_slice %12 {offsets = [7, 0], sizes = [1, 128], strides = [1, 1]} : vector<8x128xf32> to vector<1x128xf32>
    %56 = vector.broadcast %54 : vector<8x1xf32> to vector<8x128xf32>
    %57 = vector.broadcast %55 : vector<1x128xf32> to vector<8x128xf32>
    %58 = arith.mulf %56, %57 : vector<8x128xf32>
    %59 = arith.addf %53, %58 : vector<8x128xf32>
    %60 = vector.broadcast %3 : vector<1x128xf32> to vector<8x128xf32>
    %61 = arith.addf %59, %60 : vector<8x128xf32>
    %cst_15 = arith.constant 0.000000e+00 : f32
    %62 = vector.broadcast %cst_15 : f32 to vector<8x128xf32>
    %63 = arith.maximumf %61, %62 : vector<8x128xf32>
    %64 = arith.truncf %63 : vector<8x128xf32> to vector<8x128xbf16>
    %cst_16 = arith.constant dense<0.000000e+00> : vector<8x128xf32>
    %65 = tpu.matmul %64, %2, %cst_16 {dimension_numbers = #tpu.dot_dimension_numbers<[1], [0], [0], [1], [0, 0, 1, 1], [], []>} : vector<8x128xbf16>, vector<128x128xbf16>, vector<8x128xf32> -> vector<8x128xf32>
    %66 = vector.broadcast %0 : vector<8x1xf32> to vector<8x128xf32>
    %67 = arith.mulf %65, %66 : vector<8x128xf32>
    %68 = vector.extract_strided_slice %7 {offsets = [0, 0], sizes = [8, 1], strides = [1, 1]} : vector<8x8xf32> to vector<8x1xf32>
    %69 = vector.extract_strided_slice %67 {offsets = [0, 0], sizes = [1, 128], strides = [1, 1]} : vector<8x128xf32> to vector<1x128xf32>
    %70 = vector.broadcast %68 : vector<8x1xf32> to vector<8x128xf32>
    %71 = vector.broadcast %69 : vector<1x128xf32> to vector<8x128xf32>
    %72 = arith.mulf %70, %71 : vector<8x128xf32>
    %73 = vector.extract_strided_slice %7 {offsets = [0, 1], sizes = [8, 1], strides = [1, 1]} : vector<8x8xf32> to vector<8x1xf32>
    %74 = vector.extract_strided_slice %67 {offsets = [1, 0], sizes = [1, 128], strides = [1, 1]} : vector<8x128xf32> to vector<1x128xf32>
    %75 = vector.broadcast %73 : vector<8x1xf32> to vector<8x128xf32>
    %76 = vector.broadcast %74 : vector<1x128xf32> to vector<8x128xf32>
    %77 = arith.mulf %75, %76 : vector<8x128xf32>
    %78 = arith.addf %72, %77 : vector<8x128xf32>
    %79 = vector.extract_strided_slice %7 {offsets = [0, 2], sizes = [8, 1], strides = [1, 1]} : vector<8x8xf32> to vector<8x1xf32>
    %80 = vector.extract_strided_slice %67 {offsets = [2, 0], sizes = [1, 128], strides = [1, 1]} : vector<8x128xf32> to vector<1x128xf32>
    %81 = vector.broadcast %79 : vector<8x1xf32> to vector<8x128xf32>
    %82 = vector.broadcast %80 : vector<1x128xf32> to vector<8x128xf32>
    %83 = arith.mulf %81, %82 : vector<8x128xf32>
    %84 = arith.addf %78, %83 : vector<8x128xf32>
    %85 = vector.extract_strided_slice %7 {offsets = [0, 3], sizes = [8, 1], strides = [1, 1]} : vector<8x8xf32> to vector<8x1xf32>
    %86 = vector.extract_strided_slice %67 {offsets = [3, 0], sizes = [1, 128], strides = [1, 1]} : vector<8x128xf32> to vector<1x128xf32>
    %87 = vector.broadcast %85 : vector<8x1xf32> to vector<8x128xf32>
    %88 = vector.broadcast %86 : vector<1x128xf32> to vector<8x128xf32>
    %89 = arith.mulf %87, %88 : vector<8x128xf32>
    %90 = arith.addf %84, %89 : vector<8x128xf32>
    %91 = vector.extract_strided_slice %7 {offsets = [0, 4], sizes = [8, 1], strides = [1, 1]} : vector<8x8xf32> to vector<8x1xf32>
    %92 = vector.extract_strided_slice %67 {offsets = [4, 0], sizes = [1, 128], strides = [1, 1]} : vector<8x128xf32> to vector<1x128xf32>
    %93 = vector.broadcast %91 : vector<8x1xf32> to vector<8x128xf32>
    %94 = vector.broadcast %92 : vector<1x128xf32> to vector<8x128xf32>
    %95 = arith.mulf %93, %94 : vector<8x128xf32>
    %96 = arith.addf %90, %95 : vector<8x128xf32>
    %97 = vector.extract_strided_slice %7 {offsets = [0, 5], sizes = [8, 1], strides = [1, 1]} : vector<8x8xf32> to vector<8x1xf32>
    %98 = vector.extract_strided_slice %67 {offsets = [5, 0], sizes = [1, 128], strides = [1, 1]} : vector<8x128xf32> to vector<1x128xf32>
    %99 = vector.broadcast %97 : vector<8x1xf32> to vector<8x128xf32>
    %100 = vector.broadcast %98 : vector<1x128xf32> to vector<8x128xf32>
    %101 = arith.mulf %99, %100 : vector<8x128xf32>
    %102 = arith.addf %96, %101 : vector<8x128xf32>
    %103 = vector.extract_strided_slice %7 {offsets = [0, 6], sizes = [8, 1], strides = [1, 1]} : vector<8x8xf32> to vector<8x1xf32>
    %104 = vector.extract_strided_slice %67 {offsets = [6, 0], sizes = [1, 128], strides = [1, 1]} : vector<8x128xf32> to vector<1x128xf32>
    %105 = vector.broadcast %103 : vector<8x1xf32> to vector<8x128xf32>
    %106 = vector.broadcast %104 : vector<1x128xf32> to vector<8x128xf32>
    %107 = arith.mulf %105, %106 : vector<8x128xf32>
    %108 = arith.addf %102, %107 : vector<8x128xf32>
    %109 = vector.extract_strided_slice %7 {offsets = [0, 7], sizes = [8, 1], strides = [1, 1]} : vector<8x8xf32> to vector<8x1xf32>
    %110 = vector.extract_strided_slice %67 {offsets = [7, 0], sizes = [1, 128], strides = [1, 1]} : vector<8x128xf32> to vector<1x128xf32>
    %111 = vector.broadcast %109 : vector<8x1xf32> to vector<8x128xf32>
    %112 = vector.broadcast %110 : vector<1x128xf32> to vector<8x128xf32>
    %113 = arith.mulf %111, %112 : vector<8x128xf32>
    %114 = arith.addf %108, %113 : vector<8x128xf32>
    %115 = vector.broadcast %4 : vector<1x128xf32> to vector<8x128xf32>
    %116 = arith.addf %114, %115 : vector<8x128xf32>
    %cst_17 = arith.constant 0.000000e+00 : f32
    %117 = vector.broadcast %cst_17 : f32 to vector<8x128xf32>
    %118 = arith.maximumf %116, %117 : vector<8x128xf32>
    %c0_18 = arith.constant 0 : index
    %c0_19 = arith.constant 0 : index
    %c0_20 = arith.constant 0 : index
    %119 = vector.load %arg8[%c0_18, %c0_19, %c0_20] : memref<1x8x128xf32, #tpu.memory_space<vmem>>, vector<1x8x128xf32>
    %120 = vector.shape_cast %119 : vector<1x8x128xf32> to vector<8x128xf32>
    %121 = vector.shape_cast %118 : vector<8x128xf32> to vector<1x8x128xf32>
    tpu.vector_store %arg8[%c0_18, %c0_19, %c0_20], %121 {strides = array<i32>} : memref<1x8x128xf32, #tpu.memory_space<vmem>>, vector<1x8x128xf32>,
    return
  }
  func.func @transform_0(%arg0: i32) -> (i32, i32) {
    %c0_i32 = arith.constant 0 : i32
    %c0_i32_0 = arith.constant 0 : i32
    %c0_i32_1 = arith.constant 0 : i32
    return %c0_i32, %c0_i32_0 : i32, i32
  }
  func.func @transform_1(%arg0: i32) -> (i32, i32, i32) {
    %c0_i32 = arith.constant 0 : i32
    %c0_i32_0 = arith.constant 0 : i32
    %c0_i32_1 = arith.constant 0 : i32
    return %arg0, %c0_i32, %c0_i32_0 : i32, i32, i32
  }
  func.func @transform_2(%arg0: i32) -> (i32, i32, i32) {
    %c0_i32 = arith.constant 0 : i32
    %c0_i32_0 = arith.constant 0 : i32
    %c0_i32_1 = arith.constant 0 : i32
    return %arg0, %c0_i32, %c0_i32_0 : i32, i32, i32
  }
  func.func @transform_3(%arg0: i32) -> (i32, i32) {
    %c0_i32 = arith.constant 0 : i32
    %c0_i32_0 = arith.constant 0 : i32
    %c0_i32_1 = arith.constant 0 : i32
    return %c0_i32, %c0_i32_0 : i32, i32
  }
  func.func @transform_4(%arg0: i32) -> (i32, i32) {
    %c0_i32 = arith.constant 0 : i32
    %c0_i32_0 = arith.constant 0 : i32
    %c0_i32_1 = arith.constant 0 : i32
    return %c0_i32, %c0_i32_0 : i32, i32
  }
  func.func @transform_5(%arg0: i32) -> (i32, i32) {
    %c0_i32 = arith.constant 0 : i32
    %c0_i32_0 = arith.constant 0 : i32
    %c0_i32_1 = arith.constant 0 : i32
    return %c0_i32, %c0_i32_0 : i32, i32
  }
  func.func @transform_6(%arg0: i32) -> (i32, i32) {
    %c0_i32 = arith.constant 0 : i32
    %c0_i32_0 = arith.constant 0 : i32
    %c0_i32_1 = arith.constant 0 : i32
    return %c0_i32, %c0_i32_0 : i32, i32
  }
  func.func @transform_7(%arg0: i32) -> (i32, i32, i32) {
    %c0_i32 = arith.constant 0 : i32
    %c0_i32_0 = arith.constant 0 : i32
    %c0_i32_1 = arith.constant 0 : i32
    return %arg0, %c0_i32, %c0_i32_0 : i32, i32, i32
  }
}

</mosaic_0001>

<llo_original>
// kernel: tpu_custom_call.1
$region0: #{tpu_custom_call.1}
  #allocation0 [shape = 'u32[]', space=smem, size = 0x4, offset = 0x4, fixed_abs, tag = 'smem constant byte address 0x4 - core index']
  #allocation1 [shape = 'u32[144,128]{1,0:T(1,128)}', space=vmem, size = 0x12000, scoped, tag = 'internal scratch']
  %s0 = inlined_call_operand.vmem [shape: f32[8,1], index: 0, kind: input, shape index: {}]
  %s1 = inlined_call_operand.vmem [shape: bf16[2,8,8], index: 1, kind: input, shape index: {}]
  %s2 = inlined_call_operand.vmem [shape: bf16[2,8,16], index: 2, kind: input, shape index: {}]
  %s3 = inlined_call_operand.hbm [shape: bf16[16,128], index: 3, kind: input, shape index: {}]
  %s4 = inlined_call_operand.hbm [shape: bf16[128,128], index: 4, kind: input, shape index: {}]
  %s5 = inlined_call_operand.vmem [shape: f32[1,128], index: 5, kind: input, shape index: {}]
  %s6 = inlined_call_operand.vmem [shape: f32[1,128], index: 6, kind: input, shape index: {}]
  %s7 = inlined_call_operand.hbm [shape: f32[2,8,128], index: 7, kind: output, shape index: {}]
  %s8 = sld [smem:[#allocation0]]
  $region69: #{tpu_custom_call.1} parent=0
    _
  %s10 = ssub.s32 1, %s8
  %s11 = scalar_select 0, %s10, %s8
  $region1: #{tpu_custom_call.1} parent=0
    #allocation2 [shape = 'u8[4096]{0}', space=vmem, size = 0x1000, scoped, tag = 'input window, operand 3, single buffered']
    #allocation3 [shape = 's32[2]{0}', space=sflag, size = 0x8, scoped, tag = 'scoped memory for tpu_custom_call.1']
    #allocation4 [shape = 's32[2]{0}', space=sflag, size = 0x8, scoped, tag = 'scoped memory for tpu_custom_call.1']
    #allocation5 [shape = 'u8[32768]{0}', space=vmem, size = 0x8000, scoped, tag = 'input window, operand 4, single buffered']
    #allocation6 [shape = 's32[1]{0}', space=sflag, size = 0x4, scoped, tag = 'scoped memory for tpu_custom_call.1']
    #allocation7 [shape = 'u8[8192]{0}', space=vmem, size = 0x2000, scoped, tag = 'output window, operand 0']
    %12 = vsyncpa [#allocation3], 0
    %13 = vsyncpa [#allocation6], 0
    %14 = vsyncpa [#allocation4], 0
    %s15 = scalar_lea.sflag [#allocation4], 1
    %16 = vsyncpa %s15, 0
    loop: start=0, step=1, limit=4
    $region2: #{tpu_custom_call.1} parent=1 // loop_pre_header
      _
    $region3: #{tpu_custom_call.1} parent=1 // loop_header
      %s18 = sphi 0, %s22
      %p19 = scmp.ge.s32.totalorder %s18, 4
      %s26 = sphi 0, %s26
      %s28 = sphi 0, %s26
      %s29 = sphi 0, %s28
      %s43 = sphi 0, %s29
      %s49 = sphi 0, %s51
      %s52 = sphi 0, %s49
      %s53 = sphi 0, %s52
      %s69 = sphi 0, %s53
      %s75 = sphi 0, %s77
      %s78 = sphi 0, %s75
      %s79 = sphi 0, %s78
      %s95 = sphi 0, %s79
      %s99 = sphi 0, %s99
      %s101 = sphi 0, %s99
      %s102 = sphi 0, %s101
      %s116 = sphi 0, %s102
      %s120 = sphi 0, %s120
      %s122 = sphi 0, %s120
      %s123 = sphi 0, %s122
      %s137 = sphi 0, %s123
      %s141 = sphi 0, %s141
      %s143 = sphi 0, %s141
      %s144 = sphi 0, %s143
      %s158 = sphi 0, %s144
      %s162 = sphi 0, %s162
      %s164 = sphi 0, %s162
      %s165 = sphi 0, %s164
      %s179 = sphi 0, %s165
      %s185 = sphi 0, %s187
      %s188 = sphi 0, %s185
      %s189 = sphi 0, %s188
      %s205 = sphi 0, %s189
    $region4: #{tpu_custom_call.1} parent=1 // loop_header_branch
      %21 = sbr.rel (%p19) target = $region8
    $region5: #{tpu_custom_call.1} parent=1 // loop_body
      %s23 = ssub.s32 %s18, 1
      %s24 = ssub.s32 %s18, 2
      %s25 = sadd.s32 %s18, 1
      %s27 = sadd.s32 %s26, 1
      %p30 = scmp.eq.s32.totalorder %s18, 1
      %p31 = scmp.ne.s32.totalorder %s26, %s28
      %p32 = scmp.eq.s32.totalorder %s18, 0
      %p33 = por %p31, %p32
      %p34 = scmp.ne.s32.totalorder %s26, %s28
      %p35 = scmp.eq.s32.totalorder %s23, 1
      %p36 = por %p34, %p35
      %p37 = scmp.ne.s32.totalorder %s28, %s29
      %p38 = scmp.eq.s32.totalorder %s23, 0
      %p39 = por %p37, %p38
      %p40 = scmp.ne.s32.totalorder %s28, %s29
      %p41 = scmp.eq.s32.totalorder %s24, 1
      %p42 = por %p40, %p41
      %p44 = scmp.ne.s32.totalorder %s29, %s43
      %p45 = scmp.eq.s32.totalorder %s24, 0
      %p46 = por %p44, %p45
      %s47 = ssub.s32 %s18, %s25
      %p48 = scmp.eq.s32.totalorder %s47, 0
      %s50 = sadd.s32 %s49, 1
      %s51 = scalar_select %p48, %s49, %s50
      %p54 = pneg %p48
      %p55 = scmp.eq.s32.totalorder %s18, 1
      %p56 = por %p54, %p55
      %p57 = scmp.ne.s32.totalorder %s49, %s52
      %p58 = scmp.eq.s32.totalorder %s18, 0
      %p59 = por %p57, %p58
      %p60 = scmp.ne.s32.totalorder %s49, %s52
      %p61 = scmp.eq.s32.totalorder %s23, 1
      %p62 = por %p60, %p61
      %p63 = scmp.ne.s32.totalorder %s52, %s53
      %p64 = scmp.eq.s32.totalorder %s23, 0
      %p65 = por %p63, %p64
      %p66 = scmp.ne.s32.totalorder %s52, %s53
      %p67 = scmp.eq.s32.totalorder %s24, 1
      %p68 = por %p66, %p67
      %p70 = scmp.ne.s32.totalorder %s53, %s69
      %p71 = scmp.eq.s32.totalorder %s24, 0
      %p72 = por %p70, %p71
      %s73 = ssub.s32 %s18, %s25
      %p74 = scmp.eq.s32.totalorder %s73, 0
      %s76 = sadd.s32 %s75, 1
      %s77 = scalar_select %p74, %s75, %s76
      %p80 = pneg %p74
      %p81 = scmp.eq.s32.totalorder %s18, 1
      %p82 = por %p80, %p81
      %p83 = scmp.ne.s32.totalorder %s75, %s78
      %p84 = scmp.eq.s32.totalorder %s18, 0
      %p85 = por %p83, %p84
      %p86 = scmp.ne.s32.totalorder %s75, %s78
      %p87 = scmp.eq.s32.totalorder %s23, 1
      %p88 = por %p86, %p87
      %p89 = scmp.ne.s32.totalorder %s78, %s79
      %p90 = scmp.eq.s32.totalorder %s23, 0
      %p91 = por %p89, %p90
      %p92 = scmp.ne.s32.totalorder %s78, %s79
      %p93 = scmp.eq.s32.totalorder %s24, 1
      %p94 = por %p92, %p93
      %p96 = scmp.ne.s32.totalorder %s79, %s95
      %p97 = scmp.eq.s32.totalorder %s24, 0
      %p98 = por %p96, %p97
      %s100 = sadd.s32 %s99, 1
      %p103 = scmp.eq.s32.totalorder %s18, 1
      %p104 = scmp.ne.s32.totalorder %s99, %s101
      %p105 = scmp.eq.s32.totalorder %s18, 0
      %p106 = por %p104, %p105
      %p107 = scmp.ne.s32.totalorder %s99, %s101
      %p108 = scmp.eq.s32.totalorder %s23, 1
      %p109 = por %p107, %p108
      %p110 = scmp.ne.s32.totalorder %s101, %s102
      %p111 = scmp.eq.s32.totalorder %s23, 0
      %p112 = por %p110, %p111
      %p113 = scmp.ne.s32.totalorder %s101, %s102
      %p114 = scmp.eq.s32.totalorder %s24, 1
      %p115 = por %p113, %p114
      %p117 = scmp.ne.s32.totalorder %s102, %s116
      %p118 = scmp.eq.s32.totalorder %s24, 0
      %p119 = por %p117, %p118
      %s121 = sadd.s32 %s120, 1
      %p124 = scmp.eq.s32.totalorder %s18, 1
      %p125 = scmp.ne.s32.totalorder %s120, %s122
      %p126 = scmp.eq.s32.totalorder %s18, 0
      %p127 = por %p125, %p126
      %p128 = scmp.ne.s32.totalorder %s120, %s122
      %p129 = scmp.eq.s32.totalorder %s23, 1
      %p130 = por %p128, %p129
      %p131 = scmp.ne.s32.totalorder %s122, %s123
      %p132 = scmp.eq.s32.totalorder %s23, 0
      %p133 = por %p131, %p132
      %p134 = scmp.ne.s32.totalorder %s122, %s123
      %p135 = scmp.eq.s32.totalorder %s24, 1
      %p136 = por %p134, %p135
      %p138 = scmp.ne.s32.totalorder %s123, %s137
      %p139 = scmp.eq.s32.totalorder %s24, 0
      %p140 = por %p138, %p139
      %s142 = sadd.s32 %s141, 1
      %p145 = scmp.eq.s32.totalorder %s18, 1
      %p146 = scmp.ne.s32.totalorder %s141, %s143
      %p147 = scmp.eq.s32.totalorder %s18, 0
      %p148 = por %p146, %p147
      %p149 = scmp.ne.s32.totalorder %s141, %s143
      %p150 = scmp.eq.s32.totalorder %s23, 1
      %p151 = por %p149, %p150
      %p152 = scmp.ne.s32.totalorder %s143, %s144
      %p153 = scmp.eq.s32.totalorder %s23, 0
      %p154 = por %p152, %p153
      %p155 = scmp.ne.s32.totalorder %s143, %s144
      %p156 = scmp.eq.s32.totalorder %s24, 1
      %p157 = por %p155, %p156
      %p159 = scmp.ne.s32.totalorder %s144, %s158
      %p160 = scmp.eq.s32.totalorder %s24, 0
      %p161 = por %p159, %p160
      %s163 = sadd.s32 %s162, 1
      %p166 = scmp.eq.s32.totalorder %s18, 1
      %p167 = scmp.ne.s32.totalorder %s162, %s164
      %p168 = scmp.eq.s32.totalorder %s18, 0
      %p169 = por %p167, %p168
      %p170 = scmp.ne.s32.totalorder %s162, %s164
      %p171 = scmp.eq.s32.totalorder %s23, 1
      %p172 = por %p170, %p171
      %p173 = scmp.ne.s32.totalorder %s164, %s165
      %p174 = scmp.eq.s32.totalorder %s23, 0
      %p175 = por %p173, %p174
      %p176 = scmp.ne.s32.totalorder %s164, %s165
      %p177 = scmp.eq.s32.totalorder %s24, 1
      %p178 = por %p176, %p177
      %p180 = scmp.ne.s32.totalorder %s165, %s179
      %p181 = scmp.eq.s32.totalorder %s24, 0
      %p182 = por %p180, %p181
      %s183 = ssub.s32 %s18, %s25
      %p184 = scmp.eq.s32.totalorder %s183, 0
      %s186 = sadd.s32 %s185, 1
      %s187 = scalar_select %p184, %s185, %s186
      %p190 = pneg %p184
      %p191 = scmp.eq.s32.totalorder %s18, 1
      %p192 = por %p190, %p191
      %p193 = scmp.ne.s32.totalorder %s185, %s188
      %p194 = scmp.eq.s32.totalorder %s18, 0
      %p195 = por %p193, %p194
      %p196 = scmp.ne.s32.totalorder %s185, %s188
      %p197 = scmp.eq.s32.totalorder %s23, 1
      %p198 = por %p196, %p197
      %p199 = scmp.ne.s32.totalorder %s188, %s189
      %p200 = scmp.eq.s32.totalorder %s23, 0
      %p201 = por %p199, %p200
      %p202 = scmp.ne.s32.totalorder %s188, %s189
      %p203 = scmp.eq.s32.totalorder %s24, 1
      %p204 = por %p202, %p203
      %p206 = scmp.ne.s32.totalorder %s189, %s205
      %p207 = scmp.eq.s32.totalorder %s24, 0
      %p208 = por %p206, %p207
      %p209 = scmp.le.s32.totalorder 1, %s18
      %p210 = scmp.lt.s32.totalorder %s18, 3
      %p211 = pnand %p209, %p210
      %p212 = pneg %p211
      // Predicated region
      $region9: #{tpu_custom_call.1} parent=5 // pred_check
        _
      $region10: #{tpu_custom_call.1} parent=5 // pred_check_branch
        %214 = sbr.rel (%p211) target = $region12
      $region11: #{tpu_custom_call.1} parent=5 // pred_region
        %s215 = ssub.s32 %s18, 1
        // Predicated region
        $region13: #{tpu_custom_call.1} parent=11 // pred_check
          %p216 = pneg %p39
        $region14: #{tpu_custom_call.1} parent=11 // pred_check_branch
          %218 = sbr.rel (%p216) target = $region16
        $region15: #{tpu_custom_call.1} parent=11 // pred_region
          _
        $region16: #{tpu_custom_call.1} parent=11 // pred_fallthru
          _
        // Predicated region
        $region17: #{tpu_custom_call.1} parent=11 // pred_check
          %p219 = pneg %p112
        $region18: #{tpu_custom_call.1} parent=11 // pred_check_branch
          %221 = sbr.rel (%p219) target = $region20
        $region19: #{tpu_custom_call.1} parent=11 // pred_region
          %s223 = ssub.s32 128, 128
          %224 = vsyncadd [#allocation3], %s223
          %s225 = sshll.u32 [#allocation2], 4
          %s226 = int_to_ptr.vmem [resolvable:$true] %s225
          %231 = dma.hbm_to_vmem [thread:$0]  %s3, 128, %s226, [#allocation3], 64, 64, 4
        $region20: #{tpu_custom_call.1} parent=11 // pred_fallthru
          _
        // Predicated region
        $region21: #{tpu_custom_call.1} parent=11 // pred_check
          %p232 = pneg %p133
        $region22: #{tpu_custom_call.1} parent=11 // pred_check_branch
          %234 = sbr.rel (%p232) target = $region24
        $region23: #{tpu_custom_call.1} parent=11 // pred_region
          %s236 = ssub.s32 1024, 1024
          %237 = vsyncadd [#allocation6], %s236
          %s238 = sshll.u32 [#allocation5], 4
          %s239 = int_to_ptr.vmem [resolvable:$true] %s238
          %244 = dma.hbm_to_vmem [thread:$0]  %s4, 1024, %s239, [#allocation6], 64, 64, 4
        $region24: #{tpu_custom_call.1} parent=11 // pred_fallthru
          _
        // Predicated region
        $region25: #{tpu_custom_call.1} parent=11 // pred_check
          %p245 = pneg %p154
        $region26: #{tpu_custom_call.1} parent=11 // pred_check_branch
          %247 = sbr.rel (%p245) target = $region28
        $region27: #{tpu_custom_call.1} parent=11 // pred_region
          _
        $region28: #{tpu_custom_call.1} parent=11 // pred_fallthru
          _
        // Predicated region
        $region29: #{tpu_custom_call.1} parent=11 // pred_check
          %p248 = pneg %p175
        $region30: #{tpu_custom_call.1} parent=11 // pred_check_branch
          %250 = sbr.rel (%p248) target = $region32
        $region31: #{tpu_custom_call.1} parent=11 // pred_region
          _
        $region32: #{tpu_custom_call.1} parent=11 // pred_fallthru
          _
      $region12: #{tpu_custom_call.1} parent=5 // pred_fallthru
        _
      %p251 = scmp.lt.s32.totalorder %s18, 2
      // Predicated region
      $region33: #{tpu_custom_call.1} parent=5 // pred_check
        %p252 = pneg %p251
      $region34: #{tpu_custom_call.1} parent=5 // pred_check_branch
        %254 = sbr.rel (%p252) target = $region36
      $region35: #{tpu_custom_call.1} parent=5 // pred_region
        // Predicated region
        $region37: #{tpu_custom_call.1} parent=35 // pred_check
          %p255 = pneg %p59
        $region38: #{tpu_custom_call.1} parent=35 // pred_check_branch
          %257 = sbr.rel (%p255) target = $region40
        $region39: #{tpu_custom_call.1} parent=35 // pred_region
          %p258 = scmp.lt.s32.totalorder %s18, 1
          %s259 = scalar_select %p258, %s18, 1
          %s260 = smul.addr %s259, 4
          %s261 = scalar_lea.vmem %s1, %s260
        $region40: #{tpu_custom_call.1} parent=35 // pred_fallthru
          _
        // Predicated region
        $region41: #{tpu_custom_call.1} parent=35 // pred_check
          %p262 = pneg %p85
        $region42: #{tpu_custom_call.1} parent=35 // pred_check_branch
          %264 = sbr.rel (%p262) target = $region44
        $region43: #{tpu_custom_call.1} parent=35 // pred_region
          %p265 = scmp.lt.s32.totalorder %s18, 1
          %s266 = scalar_select %p265, %s18, 1
          %s267 = smul.addr %s266, 4
          %s268 = scalar_lea.vmem %s2, %s267
        $region44: #{tpu_custom_call.1} parent=35 // pred_fallthru
          _
      $region36: #{tpu_custom_call.1} parent=5 // pred_fallthru
        _
      %p269 = scmp.le.s32.totalorder 1, %s18
      %p270 = scmp.lt.s32.totalorder %s18, 3
      %p271 = pnand %p269, %p270
      %p272 = pneg %p271
      // Predicated region
      $region45: #{tpu_custom_call.1} parent=5 // pred_check
        _
      $region46: #{tpu_custom_call.1} parent=5 // pred_check_branch
        %274 = sbr.rel (%p271) target = $region48
      $region47: #{tpu_custom_call.1} parent=5 // pred_region
        %s275 = ssub.s32 %s18, 1
        // Predicated region
        $region49: #{tpu_custom_call.1} parent=47 // pred_check
          %p276 = pneg %p112
        $region50: #{tpu_custom_call.1} parent=47 // pred_check_branch
          %278 = sbr.rel (%p276) target = $region52
        $region51: #{tpu_custom_call.1} parent=47 // pred_region
          %279 = dma.done [#allocation3], 128
        $region52: #{tpu_custom_call.1} parent=47 // pred_fallthru
          _
        // Predicated region
        $region53: #{tpu_custom_call.1} parent=47 // pred_check
          %p280 = pneg %p133
        $region54: #{tpu_custom_call.1} parent=47 // pred_check_branch
          %282 = sbr.rel (%p280) target = $region56
        $region55: #{tpu_custom_call.1} parent=47 // pred_region
          %283 = dma.done [#allocation6], 1024
        $region56: #{tpu_custom_call.1} parent=47 // pred_fallthru
          _
        %p284 = pneg %p39
        %p285 = pneg %p36
        %p286 = scmp.lt.s32.totalorder %s23, 1
        %s287 = scalar_select %p286, %s23, 1
        %s288 = smul.addr %s287, 4
        %s289 = scalar_lea.vmem %s1, %s288
        %p290 = pneg %p65
        %p291 = pneg %p62
        %p292 = scmp.lt.s32.totalorder %s23, 1
        %s293 = scalar_select %p292, %s23, 1
        %s294 = smul.addr %s293, 4
        %s295 = scalar_lea.vmem %s2, %s294
        %p296 = pneg %p91
        %p297 = pneg %p88
        %p298 = pneg %p112
        %p299 = pneg %p109
        %p300 = pneg %p133
        %p301 = pneg %p130
        %p302 = pneg %p154
        %p303 = pneg %p151
        %p304 = pneg %p175
        %p305 = pneg %p172
        %p306 = pneg %p201
        %p307 = pneg %p198
        %s308 = sand.u32 %s188, 1
        %s309 = scalar_lea.sflag [#allocation4], %s308
        %s310 = sand.u32 %s188, 1
        %s311 = smul.addr %s310, 8
        %s312 = scalar_lea.vmem [#allocation7], %s311
        %p313 = scmp.lt.s32.totalorder %s23, 1
        %s314 = scalar_select %p313, %s23, 1
        %s315 = smul.addr %s314, 4
        %s316 = scalar_lea.vmem %s1, %s315
        %p317 = scmp.lt.s32.totalorder %s23, 1
        %s318 = scalar_select %p317, %s23, 1
        %s319 = smul.addr %s318, 4
        %s320 = scalar_lea.vmem %s2, %s319
        %v322 = vld [vmem:[%s0] sm:$0xff]
        %v323 = vld [vmem:[#allocation2] sm:$0xf]
        %v324 = vld [vmem:[#allocation2 + $0x4] sm:$0xf]
        %v325 = vld [vmem:[#allocation5] sm:$0xf]
        %v326 = vld [vmem:[#allocation5 + $0x4] sm:$0xf]
        %v327 = vld [vmem:[#allocation5 + $0x8] sm:$0xf]
        %v328 = vld [vmem:[#allocation5 + $0xc] sm:$0xf]
        %v329 = vld [vmem:[#allocation5 + $0x10] sm:$0xf]
        %v330 = vld [vmem:[#allocation5 + $0x14] sm:$0xf]
        %v331 = vld [vmem:[#allocation5 + $0x18] sm:$0xf]
        %v332 = vld [vmem:[#allocation5 + $0x1c] sm:$0xf]
        %v333 = vld [vmem:[#allocation5 + $0x20] sm:$0xf]
        %v334 = vld [vmem:[#allocation5 + $0x24] sm:$0xf]
        %v335 = vld [vmem:[#allocation5 + $0x28] sm:$0xf]
        %v336 = vld [vmem:[#allocation5 + $0x2c] sm:$0xf]
        %v337 = vld [vmem:[#allocation5 + $0x30] sm:$0xf]
        %v338 = vld [vmem:[#allocation5 + $0x34] sm:$0xf]
        %v339 = vld [vmem:[#allocation5 + $0x38] sm:$0xf]
        %v340 = vld [vmem:[#allocation5 + $0x3c] sm:$0xf]
        %v341 = vld [vmem:[%s5] sm:$0x1]
        %v342 = vld [vmem:[%s6] sm:$0x1]
        %v343 = vld [vmem:[%s316] sm:$0xf]
        %v344 = vunpack.c.l.bf16 %v343
        %v345 = vld [vmem:[%s320] sm:$0xf]
        %v348 = vunpack.c.l.b16 %v323
        %v349 = vunpack.c.l.b16 %v324
        %v350 = vpack.c.b16 %v349, %v348
        %vm352 = vcmask 130048
        %v354 = vsel %vm352, %v345, 0
        %356 = vmatprep.subr.bf16.mxu0 0
        %357 = vmatpush1.bf16.msra.mxu0 %v350
        %358 = vmatprep.subr.bf16.mxu0 0
        %359 = vmatpush1.bf16.msra.mxu0 0
        %360 = vmatprep.subr.bf16.mxu0 0
        %361 = vmatpush1.bf16.msra.mxu0 0
        %362 = vmatprep.subr.bf16.mxu0 0
        %363 = vmatpush1.bf16.msra.mxu0 0
        %364 = vmatprep.subr.bf16.mxu0 0
        %365 = vmatpush1.bf16.msra.mxu0 0
        %366 = vmatprep.subr.bf16.mxu0 0
        %367 = vmatpush1.bf16.msra.mxu0 0
        %368 = vmatprep.subr.bf16.mxu0 0
        %369 = vmatpush1.bf16.msra.mxu0 0
        %370 = vmatprep.subr.bf16.mxu0 0
        %371 = vmatpush1.bf16.msra.mxu0 0
        %372 = vmatprep.subr.bf16.mxu0 0
        %373 = vmatpush1.bf16.msra.mxu0 0
        %374 = vmatprep.subr.bf16.mxu0 0
        %375 = vmatpush1.bf16.msra.mxu0 0
        %376 = vmatprep.subr.bf16.mxu0 0
        %377 = vmatpush1.bf16.msra.mxu0 0
        %378 = vmatprep.subr.bf16.mxu0 0
        %379 = vmatpush1.bf16.msra.mxu0 0
        %380 = vmatprep.subr.bf16.mxu0 0
        %381 = vmatpush1.bf16.msra.mxu0 0
        %382 = vmatprep.subr.bf16.mxu0 0
        %383 = vmatpush1.bf16.msra.mxu0 0
        %384 = vmatprep.subr.bf16.mxu0 0
        %385 = vmatpush1.bf16.msra.mxu0 0
        %386 = vmatprep.subr.bf16.mxu0 0
        %387 = vmatpush1.bf16.msra.mxu0 0
        %388 = vmatprep.mubr.bf16.mxu0 0
        %389 = vmatmul.mubr.bf16.gmra.mrb[0].mxu0 %v354
        %v390 = vpop.f32.mrb[0].mxu0
        %v391 = vadd.f32 0.0, %v390
        %v392 = vpop.f32.mrb[0].mxu0
        %v393 = vpop.f32.mrb[0].mxu0
        %v394 = vpop.f32.mrb[0].mxu0
        %395 = vdwg.mxu0
        %397 = vset.pattern.permute.xlu0 0
        %398 = vperm.xlu0 %397, %v322
        %v399 = vpop.permute.xlu0 %398
        %v401 = vmul.f32 %v391, %v399
        %403 = vset.pattern.permute.xlu0 0
        %404 = vperm.xlu0 %403, %v344
        %v405 = vpop.permute.xlu0 %404
        %v407 = vlaneseq
        %v408 = vshrl.u32 %v407, 7
        %v409 = vsub.s32 0, %v408
        %v410 = vrot.slane %v401, %v409
        %v411 = vmul.f32 %v405, %v410
        %412 = vset.pattern.permute.xlu0 1
        %413 = vperm.xlu0 %412, %v344
        %v414 = vpop.permute.xlu0 %413
        %v416 = vlaneseq
        %v417 = vshrl.u32 %v416, 7
        %v418 = vsub.s32 1, %v417
        %v419 = vrot.slane %v401, %v418
        %v420 = vmul.f32 %v414, %v419
        %v421 = vadd.f32 %v411, %v420
        %422 = vset.pattern.permute.xlu0 2
        %423 = vperm.xlu0 %422, %v344
        %v424 = vpop.permute.xlu0 %423
        %v426 = vlaneseq
        %v427 = vshrl.u32 %v426, 7
        %v428 = vsub.s32 2, %v427
        %v429 = vrot.slane %v401, %v428
        %v430 = vmul.f32 %v424, %v429
        %v431 = vadd.f32 %v421, %v430
        %432 = vset.pattern.permute.xlu0 3
        %433 = vperm.xlu0 %432, %v344
        %v434 = vpop.permute.xlu0 %433
        %v436 = vlaneseq
        %v437 = vshrl.u32 %v436, 7
        %v438 = vsub.s32 3, %v437
        %v439 = vrot.slane %v401, %v438
        %v440 = vmul.f32 %v434, %v439
        %v441 = vadd.f32 %v431, %v440
        %442 = vset.pattern.permute.xlu0 4
        %443 = vperm.xlu0 %442, %v344
        %v444 = vpop.permute.xlu0 %443
        %v446 = vlaneseq
        %v447 = vshrl.u32 %v446, 7
        %v448 = vsub.s32 4, %v447
        %v449 = vrot.slane %v401, %v448
        %v450 = vmul.f32 %v444, %v449
        %v451 = vadd.f32 %v441, %v450
        %452 = vset.pattern.permute.xlu0 5
        %453 = vperm.xlu0 %452, %v344
        %v454 = vpop.permute.xlu0 %453
        %v456 = vlaneseq
        %v457 = vshrl.u32 %v456, 7
        %v458 = vsub.s32 5, %v457
        %v459 = vrot.slane %v401, %v458
        %v460 = vmul.f32 %v454, %v459
        %v461 = vadd.f32 %v451, %v460
        %462 = vset.pattern.permute.xlu0 6
        %463 = vperm.xlu0 %462, %v344
        %v464 = vpop.permute.xlu0 %463
        %v466 = vlaneseq
        %v467 = vshrl.u32 %v466, 7
        %v468 = vsub.s32 6, %v467
        %v469 = vrot.slane %v401, %v468
        %v470 = vmul.f32 %v464, %v469
        %v471 = vadd.f32 %v461, %v470
        %472 = vset.pattern.permute.xlu0 7
        %473 = vperm.xlu0 %472, %v344
        %v474 = vpop.permute.xlu0 %473
        %v476 = vlaneseq
        %v477 = vshrl.u32 %v476, 7
        %v478 = vsub.s32 7, %v477
        %v479 = vrot.slane %v401, %v478
        %v480 = vmul.f32 %v474, %v479
        %v481 = vadd.f32 %v471, %v480
        %v483 = vlaneseq
        %v484 = vshrl.u32 %v483, 7
        %v485 = vsub.s32 0, %v484
        %v486 = vrot.slane %v341, %v485
        %v488 = vadd.f32 %v481, %v486
        %v489 = vmax.f32 %v488, 0.0
        %v490 = vpack.c.bf16 %v489, %v489
        %v507 = vunpack.c.l.b16 %v325
        %v508 = vunpack.c.l.b16 %v326
        %v509 = vunpack.c.l.b16 %v327
        %v510 = vunpack.c.l.b16 %v328
        %v511 = vunpack.c.l.b16 %v329
        %v512 = vunpack.c.l.b16 %v330
        %v513 = vunpack.c.l.b16 %v331
        %v514 = vunpack.c.l.b16 %v332
        %v515 = vunpack.c.l.b16 %v333
        %v516 = vunpack.c.l.b16 %v334
        %v517 = vunpack.c.l.b16 %v335
        %v518 = vunpack.c.l.b16 %v336
        %v519 = vunpack.c.l.b16 %v337
        %v520 = vunpack.c.l.b16 %v338
        %v521 = vunpack.c.l.b16 %v339
        %v522 = vunpack.c.l.b16 %v340
        %v523 = vpack.c.b16 %v508, %v507
        %v524 = vpack.c.b16 %v510, %v509
        %v525 = vpack.c.b16 %v512, %v511
        %v526 = vpack.c.b16 %v514, %v513
        %v527 = vpack.c.b16 %v516, %v515
        %v528 = vpack.c.b16 %v518, %v517
        %v529 = vpack.c.b16 %v520, %v519
        %v530 = vpack.c.b16 %v522, %v521
        %539 = vmatprep.subr.bf16.mxu0 0
        %540 = vmatpush1.bf16.msra.mxu0 %v523
        %541 = vmatprep.subr.bf16.mxu0 0
        %542 = vmatpush1.bf16.msra.mxu0 %v524
        %543 = vmatprep.subr.bf16.mxu0 0
        %544 = vmatpush1.bf16.msra.mxu0 %v525
        %545 = vmatprep.subr.bf16.mxu0 0
        %546 = vmatpush1.bf16.msra.mxu0 %v526
        %547 = vmatprep.subr.bf16.mxu0 0
        %548 = vmatpush1.bf16.msra.mxu0 %v527
        %549 = vmatprep.subr.bf16.mxu0 0
        %550 = vmatpush1.bf16.msra.mxu0 %v528
        %551 = vmatprep.subr.bf16.mxu0 0
        %552 = vmatpush1.bf16.msra.mxu0 %v529
        %553 = vmatprep.subr.bf16.mxu0 0
        %554 = vmatpush1.bf16.msra.mxu0 %v530
        %555 = vmatprep.subr.bf16.mxu0 0
        %556 = vmatpush1.bf16.msra.mxu0 0
        %557 = vmatprep.subr.bf16.mxu0 0
        %558 = vmatpush1.bf16.msra.mxu0 0
        %559 = vmatprep.subr.bf16.mxu0 0
        %560 = vmatpush1.bf16.msra.mxu0 0
        %561 = vmatprep.subr.bf16.mxu0 0
        %562 = vmatpush1.bf16.msra.mxu0 0
        %563 = vmatprep.subr.bf16.mxu0 0
        %564 = vmatpush1.bf16.msra.mxu0 0
        %565 = vmatprep.subr.bf16.mxu0 0
        %566 = vmatpush1.bf16.msra.mxu0 0
        %567 = vmatprep.subr.bf16.mxu0 0
        %568 = vmatpush1.bf16.msra.mxu0 0
        %569 = vmatprep.subr.bf16.mxu0 0
        %570 = vmatpush1.bf16.msra.mxu0 0
        %571 = vmatprep.mubr.bf16.mxu0 0
        %572 = vmatmul.mubr.bf16.gmra.mrb[0].mxu0 %v490
        %v573 = vpop.f32.mrb[0].mxu0
        %v574 = vadd.f32 0.0, %v573
        %v575 = vpop.f32.mrb[0].mxu0
        %v576 = vpop.f32.mrb[0].mxu0
        %v577 = vpop.f32.mrb[0].mxu0
        %578 = vdwg.mxu0
        %v579 = vmul.f32 %v574, %v399
        %v580 = vlaneseq
        %v581 = vshrl.u32 %v580, 7
        %v582 = vsub.s32 0, %v581
        %v583 = vrot.slane %v579, %v582
        %v584 = vmul.f32 %v405, %v583
        %v585 = vlaneseq
        %v586 = vshrl.u32 %v585, 7
        %v587 = vsub.s32 1, %v586
        %v588 = vrot.slane %v579, %v587
        %v589 = vmul.f32 %v414, %v588
        %v590 = vadd.f32 %v584, %v589
        %v591 = vlaneseq
        %v592 = vshrl.u32 %v591, 7
        %v593 = vsub.s32 2, %v592
        %v594 = vrot.slane %v579, %v593
        %v595 = vmul.f32 %v424, %v594
        %v596 = vadd.f32 %v590, %v595
        %v597 = vlaneseq
        %v598 = vshrl.u32 %v597, 7
        %v599 = vsub.s32 3, %v598
        %v600 = vrot.slane %v579, %v599
        %v601 = vmul.f32 %v434, %v600
        %v602 = vadd.f32 %v596, %v601
        %v603 = vlaneseq
        %v604 = vshrl.u32 %v603, 7
        %v605 = vsub.s32 4, %v604
        %v606 = vrot.slane %v579, %v605
        %v607 = vmul.f32 %v444, %v606
        %v608 = vadd.f32 %v602, %v607
        %v609 = vlaneseq
        %v610 = vshrl.u32 %v609, 7
        %v611 = vsub.s32 5, %v610
        %v612 = vrot.slane %v579, %v611
        %v613 = vmul.f32 %v454, %v612
        %v614 = vadd.f32 %v608, %v613
        %v615 = vlaneseq
        %v616 = vshrl.u32 %v615, 7
        %v617 = vsub.s32 6, %v616
        %v618 = vrot.slane %v579, %v617
        %v619 = vmul.f32 %v464, %v618
        %v620 = vadd.f32 %v614, %v619
        %v621 = vlaneseq
        %v622 = vshrl.u32 %v621, 7
        %v623 = vsub.s32 7, %v622
        %v624 = vrot.slane %v579, %v623
        %v625 = vmul.f32 %v474, %v624
        %v626 = vadd.f32 %v620, %v625
        %v628 = vlaneseq
        %v629 = vshrl.u32 %v628, 7
        %v630 = vsub.s32 0, %v629
        %v631 = vrot.slane %v342, %v630
        %v633 = vadd.f32 %v626, %v631
        %v634 = vmax.f32 %v633, 0.0
        %635 = vst [vmem:[%s312] sm:$0xff] %v634
        %s636 = sand.u32 %s188, 1
        %s637 = scalar_lea.sflag [#allocation4], %s636
        %s638 = sand.u32 %s188, 1
        %s639 = smul.addr %s638, 8
        %s640 = scalar_lea.vmem [#allocation7], %s639
        // Predicated region
        $region57: #{tpu_custom_call.1} parent=47 // pred_check
          %p641 = pneg %p198
        $region58: #{tpu_custom_call.1} parent=47 // pred_check_branch
          %643 = sbr.rel (%p641) target = $region60
        $region59: #{tpu_custom_call.1} parent=47 // pred_region
          %s645 = ssub.s32 128, 128
          %646 = vsyncadd %s637, %s645
          %s647 = smul.addr %s23, 128
          %s648 = scalar_lea.hbm %s7, %s647
          %s650 = sshll.u32 %s640, 4
          %s651 = int_to_ptr.vmem [resolvable:$true] %s650
          %653 = dma.vmem_to_hbm [thread:$0]  %s651, 128, %s648, %s637
        $region60: #{tpu_custom_call.1} parent=47 // pred_fallthru
          _
      $region48: #{tpu_custom_call.1} parent=5 // pred_fallthru
        _
      %p654 = scmp.le.s32.totalorder 2, %s18
      // Predicated region
      $region61: #{tpu_custom_call.1} parent=5 // pred_check
        %p655 = pneg %p654
      $region62: #{tpu_custom_call.1} parent=5 // pred_check_branch
        %657 = sbr.rel (%p655) target = $region64
      $region63: #{tpu_custom_call.1} parent=5 // pred_region
        %s658 = ssub.s32 %s18, 2
        // Predicated region
        $region65: #{tpu_custom_call.1} parent=63 // pred_check
          %p659 = pneg %p204
        $region66: #{tpu_custom_call.1} parent=63 // pred_check_branch
          %661 = sbr.rel (%p659) target = $region68
        $region67: #{tpu_custom_call.1} parent=63 // pred_region
          %s662 = sand.u32 %s189, 1
          %s663 = scalar_lea.sflag [#allocation4], %s662
          %s664 = sand.u32 %s189, 1
          %s665 = smul.addr %s664, 8
          %s666 = scalar_lea.vmem [#allocation7], %s665
          %667 = dma.done %s663, 128
        $region68: #{tpu_custom_call.1} parent=63 // pred_fallthru
          _
      $region64: #{tpu_custom_call.1} parent=5 // pred_fallthru
        _
    $region6: #{tpu_custom_call.1} parent=1 // loop_footer
      %s22 = sadd.s32 1, %s18
    $region7: #{tpu_custom_call.1} parent=1 // loop_footer_branch
      %17 = sbr.rel target = $region3
    $region8: #{tpu_custom_call.1} parent=1 // loop_exit
      _
    %668 = vsyncpa [#allocation3], 1
    %s669 = scalar_lea.sflag [#allocation3], 1
    %670 = vsyncpa %s669, 1
    %671 = vsyncpa [#allocation6], 1
    %672 = vsyncpa [#allocation4], 1
    %s673 = scalar_lea.sflag [#allocation4], 1
    %674 = vsyncpa %s673, 1

</llo_original>
